<compile_context>
chip_gen: v5e
topology: v5e:2x2
jax: 0.10.0
libtpu: 0.0.40
codegen_flags: <defaults>
</compile_context>

<pallas_src>
import jax
import jax.numpy as jnp
from jax import lax
from jax.experimental import pallas as pl
from jax.experimental.pallas import tpu as pltpu

# Model dims (the PyTorch snippet leaves D and C free; pick small ones).
D = 8    # input feature size
H = 32   # hidden size (fixed to 32 by the module)
C = 4    # output classes


def rnn_kernel(x_ref, w1_ref, w2_ref, out_ref):
    """Single-shot RNN forward.

    x_ref:   (B, T, D)     batch-first input, unchanged from the caller
    w1_ref:  (D+H+1, H)    packed [W_ih^T ; W_hh^T ; b_ih + b_hh]
    w2_ref:  (H+1, C)      packed [W_fc^T ; b_fc]
    out_ref: (B, C)
    """
    B, T, Din = x_ref.shape
    Hd = w1_ref.shape[1]

    # --- Unpack the two parameter slabs (static, sublane-aligned row slices). ---
    w_ih = w1_ref[0:Din, :]                     # (D, H)  = W_ih^T   rows [0, D)
    w_hh = w1_ref[Din:Din + Hd, :]              # (H, H)  = W_hh^T   rows [D, D+H)
    b = w1_ref[Din + Hd:Din + Hd + 1, :]        # (1, H)  = b_ih+b_hh row D+H
    w_fc = w2_ref[0:Hd, :]                      # (H, C)  = W_fc^T
    b_fc = w2_ref[Hd:Hd + 1, :]                 # (1, C)

    # --- Input projection for ALL timesteps in one MXU matmul, bias folded in. ---
    # (B, T, D) -> (B*T, D) is a layout-trivial collapse of leading dims.
    x2 = x_ref[...].reshape(B * T, Din)
    xproj = (
        jnp.dot(x2, w_ih, preferred_element_type=jnp.float32) + b
    ).reshape(B, T, Hd)                         # (B, T, H), row (b, t)

    # bf16 operands -> single-pass MXU per recurrent step; f32 accumulation.
    w_hh_bf = w_hh.astype(jnp.bfloat16)

    # t = 0: h_prev == 0, so h = tanh(xproj_0) with no recurrent matmul.
    h = jnp.tanh(xproj[:, 0, :])                # (B, H)

    # Serial recurrence.  Only h -> dot -> add -> tanh is on the dependency
    # chain; the xproj[:, t, :] extraction is independent of h and overlaps.
    # T is small & static -> full unroll (switch to lax.fori_loop if T grows).
    for t in range(1, T):
        hw = jnp.dot(h.astype(jnp.bfloat16), w_hh_bf,
                     preferred_element_type=jnp.float32)
        h = jnp.tanh(xproj[:, t, :] + hw)

    # Final Linear on the last hidden state (== rnn_out[:, -1, :] in PyTorch).
    out_ref[...] = jnp.dot(h, w_fc, preferred_element_type=jnp.float32) + b_fc


def simple_rnn_forward(x, w1_packed, w2_packed):
    """x: (B, T, D) float32 batch-first. Packed params from pack_params().

    Returns (B, C) float32 logits.
    """
    B, T, _ = x.shape
    C_out = w2_packed.shape[1]
    # Gridless call: single kernel invocation, every operand resident whole in
    # VMEM (total footprint ~6 KB -> no pipelining, no tiling, no vmem tuning).
    return pl.pallas_call(
        rnn_kernel,
        out_shape=jax.ShapeDtypeStruct((B, C_out), jnp.float32),
        in_specs=[
            pl.BlockSpec(memory_space=pltpu.MemorySpace.VMEM),
            pl.BlockSpec(memory_space=pltpu.MemorySpace.VMEM),
            pl.BlockSpec(memory_space=pltpu.MemorySpace.VMEM),
        ],
        out_specs=pl.BlockSpec(memory_space=pltpu.MemorySpace.VMEM),
    )(x, w1_packed, w2_packed)


def pack_params(w_ih, w_hh, b_ih, b_hh, w_fc, b_fc):
    """Pack once at module init: 2 slabs instead of 6 tiny operands."""
    w1_packed = jnp.concatenate(
        [w_ih.T, w_hh.T, (b_ih + b_hh)[None, :]], axis=0)   # (D+H+1, H)
    w2_packed = jnp.concatenate([w_fc.T, b_fc[None, :]], axis=0)  # (H+1, C)
    return w1_packed, w2_packed


def reference_forward(x, w_ih, w_hh, b_ih, b_hh, w_fc, b_fc):
    """Pure-JAX f32 reference mirroring torch.nn.RNN + Linear semantics."""
    B, T, _ = x.shape
    h = jnp.zeros((B, H), jnp.float32)

    def step(h, x_t):
        h_new = jnp.tanh(x_t @ w_ih.T + b_ih + h @ w_hh.T + b_hh)
        return h_new, h_new

    h_last, _ = lax.scan(step, h, jnp.transpose(x, (1, 0, 2)))
    return h_last @ w_fc.T + b_fc


if __name__ == "__main__":
    key = jax.random.PRNGKey(0)
    kx, k1, k2, k3, k4, k5, k6 = jax.random.split(key, 7)

    B, T = 2, 8
    x = jax.random.normal(kx, (B, T, D), dtype=jnp.float32)

    # Deterministic parameter init (PyTorch-style uniform(-1/sqrt(H), 1/sqrt(H))).
    bound = 1.0 / jnp.sqrt(jnp.float32(H))
    w_ih = jax.random.uniform(k1, (H, D), jnp.float32, -bound, bound)
    w_hh = jax.random.uniform(k2, (H, H), jnp.float32, -bound, bound)
    b_ih = jax.random.uniform(k3, (H,), jnp.float32, -bound, bound)
    b_hh = jax.random.uniform(k4, (H,), jnp.float32, -bound, bound)
    w_fc = jax.random.uniform(k5, (C, H), jnp.float32, -bound, bound)
    b_fc = jax.random.uniform(k6, (C,), jnp.float32, -bound, bound)

    # Pack parameters once (module init time, not per call).
    w1_packed, w2_packed = pack_params(w_ih, w_hh, b_ih, b_hh, w_fc, b_fc)

    out = simple_rnn_forward(x, w1_packed, w2_packed)
    out = jax.block_until_ready(out)

    ref = reference_forward(x, w_ih, w_hh, b_ih, b_hh, w_fc, b_fc)
    assert out.shape == (B, C)
    # Tolerance relaxed vs. pure-f32 because the recurrent matmul uses bf16 MXU
    # inputs (f32 accumulation); observed error is a few 1e-3.
    assert jnp.allclose(out, ref, atol=2e-2, rtol=2e-2), float(
        jnp.max(jnp.abs(out - ref)))

    print("KERNEL_OK")
</pallas_src>

<mosaic_0001>
module attributes {stable_mosaic.version = 11 : i64} {
  func.func @rnn_kernel(%arg0: memref<2x8x8xf32, #tpu.memory_space<vmem>>, %arg1: memref<41x32xf32, #tpu.memory_space<vmem>>, %arg2: memref<33x4xf32, #tpu.memory_space<vmem>>, %arg3: memref<2x4xf32, #tpu.memory_space<vmem>>) attributes {dimension_semantics = [], scalar_prefetch = 0 : i64, scratch_operands = 0 : i64, tpu.core_type = #tpu.core_type<tc>} {
    %c0 = arith.constant 0 : index
    %c0_0 = arith.constant 0 : index
    %0 = vector.load %arg1[%c0, %c0_0] : memref<41x32xf32, #tpu.memory_space<vmem>>, vector<8x32xf32>
    %c8 = arith.constant 8 : index
    %c0_1 = arith.constant 0 : index
    %1 = vector.load %arg1[%c8, %c0_1] : memref<41x32xf32, #tpu.memory_space<vmem>>, vector<32x32xf32>
    %c40 = arith.constant 40 : index
    %c0_2 = arith.constant 0 : index
    %2 = vector.load %arg1[%c40, %c0_2] : memref<41x32xf32, #tpu.memory_space<vmem>>, vector<1x32xf32>
    %c0_3 = arith.constant 0 : index
    %c0_4 = arith.constant 0 : index
    %3 = vector.load %arg2[%c0_3, %c0_4] : memref<33x4xf32, #tpu.memory_space<vmem>>, vector<32x4xf32>
    %c32 = arith.constant 32 : index
    %c0_5 = arith.constant 0 : index
    %4 = vector.load %arg2[%c32, %c0_5] : memref<33x4xf32, #tpu.memory_space<vmem>>, vector<1x4xf32>
    %c0_6 = arith.constant 0 : index
    %c0_7 = arith.constant 0 : index
    %c0_8 = arith.constant 0 : index
    %5 = vector.load %arg0[%c0_6, %c0_7, %c0_8] : memref<2x8x8xf32, #tpu.memory_space<vmem>>, vector<2x8x8xf32>
    %6 = vector.shape_cast %5 : vector<2x8x8xf32> to vector<16x8xf32>
    %cst = arith.constant dense<0.000000e+00> : vector<16x32xf32>
    %7 = tpu.matmul %6, %0, %cst {dimension_numbers = #tpu.dot_dimension_numbers<[1], [0], [0], [1], [0, 0, 1, 1], [], []>} : vector<16x8xf32>, vector<8x32xf32>, vector<16x32xf32> -> vector<16x32xf32>
    %8 = vector.broadcast %2 : vector<1x32xf32> to vector<16x32xf32>
    %9 = arith.addf %7, %8 : vector<16x32xf32>
    %10 = vector.shape_cast %9 : vector<16x32xf32> to vector<2x8x32xf32>
    %11 = arith.truncf %1 : vector<32x32xf32> to vector<32x32xbf16>
    %12 = vector.extract_strided_slice %10 {offsets = [0, 0, 0], sizes = [2, 1, 32], strides = [1, 1, 1]} : vector<2x8x32xf32> to vector<2x1x32xf32>
    %13 = vector.shape_cast %12 : vector<2x1x32xf32> to vector<2x32xf32>
    %14 = math.tanh %13 : vector<2x32xf32>
    %15 = arith.truncf %14 : vector<2x32xf32> to vector<2x32xbf16>
    %cst_9 = arith.constant dense<0.000000e+00> : vector<2x32xf32>
    %16 = tpu.matmul %15, %11, %cst_9 {dimension_numbers = #tpu.dot_dimension_numbers<[1], [0], [0], [1], [0, 0, 1, 1], [], []>} : vector<2x32xbf16>, vector<32x32xbf16>, vector<2x32xf32> -> vector<2x32xf32>
    %17 = vector.extract_strided_slice %10 {offsets = [0, 1, 0], sizes = [2, 1, 32], strides = [1, 1, 1]} : vector<2x8x32xf32> to vector<2x1x32xf32>
    %18 = vector.shape_cast %17 : vector<2x1x32xf32> to vector<2x32xf32>
    %19 = arith.addf %18, %16 : vector<2x32xf32>
    %20 = math.tanh %19 : vector<2x32xf32>
    %21 = arith.truncf %20 : vector<2x32xf32> to vector<2x32xbf16>
    %cst_10 = arith.constant dense<0.000000e+00> : vector<2x32xf32>
    %22 = tpu.matmul %21, %11, %cst_10 {dimension_numbers = #tpu.dot_dimension_numbers<[1], [0], [0], [1], [0, 0, 1, 1], [], []>} : vector<2x32xbf16>, vector<32x32xbf16>, vector<2x32xf32> -> vector<2x32xf32>
    %23 = vector.extract_strided_slice %10 {offsets = [0, 2, 0], sizes = [2, 1, 32], strides = [1, 1, 1]} : vector<2x8x32xf32> to vector<2x1x32xf32>
    %24 = vector.shape_cast %23 : vector<2x1x32xf32> to vector<2x32xf32>
    %25 = arith.addf %24, %22 : vector<2x32xf32>
    %26 = math.tanh %25 : vector<2x32xf32>
    %27 = arith.truncf %26 : vector<2x32xf32> to vector<2x32xbf16>
    %cst_11 = arith.constant dense<0.000000e+00> : vector<2x32xf32>
    %28 = tpu.matmul %27, %11, %cst_11 {dimension_numbers = #tpu.dot_dimension_numbers<[1], [0], [0], [1], [0, 0, 1, 1], [], []>} : vector<2x32xbf16>, vector<32x32xbf16>, vector<2x32xf32> -> vector<2x32xf32>
    %29 = vector.extract_strided_slice %10 {offsets = [0, 3, 0], sizes = [2, 1, 32], strides = [1, 1, 1]} : vector<2x8x32xf32> to vector<2x1x32xf32>
    %30 = vector.shape_cast %29 : vector<2x1x32xf32> to vector<2x32xf32>
    %31 = arith.addf %30, %28 : vector<2x32xf32>
    %32 = math.tanh %31 : vector<2x32xf32>
    %33 = arith.truncf %32 : vector<2x32xf32> to vector<2x32xbf16>
    %cst_12 = arith.constant dense<0.000000e+00> : vector<2x32xf32>
    %34 = tpu.matmul %33, %11, %cst_12 {dimension_numbers = #tpu.dot_dimension_numbers<[1], [0], [0], [1], [0, 0, 1, 1], [], []>} : vector<2x32xbf16>, vector<32x32xbf16>, vector<2x32xf32> -> vector<2x32xf32>
    %35 = vector.extract_strided_slice %10 {offsets = [0, 4, 0], sizes = [2, 1, 32], strides = [1, 1, 1]} : vector<2x8x32xf32> to vector<2x1x32xf32>
    %36 = vector.shape_cast %35 : vector<2x1x32xf32> to vector<2x32xf32>
    %37 = arith.addf %36, %34 : vector<2x32xf32>
    %38 = math.tanh %37 : vector<2x32xf32>
    %39 = arith.truncf %38 : vector<2x32xf32> to vector<2x32xbf16>
    %cst_13 = arith.constant dense<0.000000e+00> : vector<2x32xf32>
    %40 = tpu.matmul %39, %11, %cst_13 {dimension_numbers = #tpu.dot_dimension_numbers<[1], [0], [0], [1], [0, 0, 1, 1], [], []>} : vector<2x32xbf16>, vector<32x32xbf16>, vector<2x32xf32> -> vector<2x32xf32>
    %41 = vector.extract_strided_slice %10 {offsets = [0, 5, 0], sizes = [2, 1, 32], strides = [1, 1, 1]} : vector<2x8x32xf32> to vector<2x1x32xf32>
    %42 = vector.shape_cast %41 : vector<2x1x32xf32> to vector<2x32xf32>
    %43 = arith.addf %42, %40 : vector<2x32xf32>
    %44 = math.tanh %43 : vector<2x32xf32>
    %45 = arith.truncf %44 : vector<2x32xf32> to vector<2x32xbf16>
    %cst_14 = arith.constant dense<0.000000e+00> : vector<2x32xf32>
    %46 = tpu.matmul %45, %11, %cst_14 {dimension_numbers = #tpu.dot_dimension_numbers<[1], [0], [0], [1], [0, 0, 1, 1], [], []>} : vector<2x32xbf16>, vector<32x32xbf16>, vector<2x32xf32> -> vector<2x32xf32>
    %47 = vector.extract_strided_slice %10 {offsets = [0, 6, 0], sizes = [2, 1, 32], strides = [1, 1, 1]} : vector<2x8x32xf32> to vector<2x1x32xf32>
    %48 = vector.shape_cast %47 : vector<2x1x32xf32> to vector<2x32xf32>
    %49 = arith.addf %48, %46 : vector<2x32xf32>
    %50 = math.tanh %49 : vector<2x32xf32>
    %51 = arith.truncf %50 : vector<2x32xf32> to vector<2x32xbf16>
    %cst_15 = arith.constant dense<0.000000e+00> : vector<2x32xf32>
    %52 = tpu.matmul %51, %11, %cst_15 {dimension_numbers = #tpu.dot_dimension_numbers<[1], [0], [0], [1], [0, 0, 1, 1], [], []>} : vector<2x32xbf16>, vector<32x32xbf16>, vector<2x32xf32> -> vector<2x32xf32>
    %53 = vector.extract_strided_slice %10 {offsets = [0, 7, 0], sizes = [2, 1, 32], strides = [1, 1, 1]} : vector<2x8x32xf32> to vector<2x1x32xf32>
    %54 = vector.shape_cast %53 : vector<2x1x32xf32> to vector<2x32xf32>
    %55 = arith.addf %54, %52 : vector<2x32xf32>
    %56 = math.tanh %55 : vector<2x32xf32>
    %cst_16 = arith.constant dense<0.000000e+00> : vector<2x4xf32>
    %57 = tpu.matmul %56, %3, %cst_16 {dimension_numbers = #tpu.dot_dimension_numbers<[1], [0], [0], [1], [0, 0, 1, 1], [], []>} : vector<2x32xf32>, vector<32x4xf32>, vector<2x4xf32> -> vector<2x4xf32>
    %58 = vector.broadcast %4 : vector<1x4xf32> to vector<2x4xf32>
    %59 = arith.addf %57, %58 : vector<2x4xf32>
    %c0_17 = arith.constant 0 : index
    %c0_18 = arith.constant 0 : index
    %60 = vector.load %arg3[%c0_17, %c0_18] : memref<2x4xf32, #tpu.memory_space<vmem>>, vector<2x4xf32>
    tpu.vector_store %arg3[%c0_17, %c0_18], %59 {strides = array<i32>} : memref<2x4xf32, #tpu.memory_space<vmem>>, vector<2x4xf32>,
    return
  }
}

</mosaic_0001>

<llo_original>
// kernel: tpu_custom_call.1
$region0: #{tpu_custom_call.1}
  #allocation0 [shape = 'u32[]', space=smem, size = 0x4, offset = 0x4, fixed_abs, tag = 'smem constant byte address 0x4 - core index']
  #allocation1 [shape = 'u32[72,128]{1,0:T(1,128)}', space=vmem, size = 0x9000, scoped, tag = 'internal scratch']
  %s0 = inlined_call_operand.vmem [shape: f32[2,8,8], index: 0, kind: input, shape index: {}]
  %s1 = inlined_call_operand.vmem [shape: f32[41,32], index: 1, kind: input, shape index: {}]
  %s2 = inlined_call_operand.vmem [shape: f32[33,4], index: 2, kind: input, shape index: {}]
  %s3 = inlined_call_operand.hbm [shape: f32[2,4], index: 3, kind: output, shape index: {}]
  %s4 = sld [smem:[#allocation0]]
  $region22: #{tpu_custom_call.1} parent=0
    _
  %s6 = ssub.s32 1, %s4
  %s7 = scalar_select 0, %s6, %s4
  $region1: #{tpu_custom_call.1} parent=0
    #allocation2 [shape = 'u8[1024]{0}', space=vmem, size = 0x400, scoped, tag = 'output window, operand 0, single buffered']
    #allocation3 [shape = 's32[1]{0}', space=sflag, size = 0x4, scoped, tag = 'scoped memory for tpu_custom_call.1']
    %8 = vsyncpa [#allocation3], 0
    // Predicated region
    $region2: #{tpu_custom_call.1} parent=1 // pred_check
      _
    $region3: #{tpu_custom_call.1} parent=1 // pred_check_branch
      %10 = sbr.rel (0) target = $region5
    $region4: #{tpu_custom_call.1} parent=1 // pred_region
      _
    $region5: #{tpu_custom_call.1} parent=1 // pred_fallthru
      _
    // Predicated region
    $region6: #{tpu_custom_call.1} parent=1 // pred_check
      _
    $region7: #{tpu_custom_call.1} parent=1 // pred_check_branch
      %12 = sbr.rel (0) target = $region9
    $region8: #{tpu_custom_call.1} parent=1 // pred_region
      _
    $region9: #{tpu_custom_call.1} parent=1 // pred_fallthru
      _
    // Predicated region
    $region10: #{tpu_custom_call.1} parent=1 // pred_check
      _
    $region11: #{tpu_custom_call.1} parent=1 // pred_check_branch
      %14 = sbr.rel (0) target = $region13
    $region12: #{tpu_custom_call.1} parent=1 // pred_region
      _
    $region13: #{tpu_custom_call.1} parent=1 // pred_fallthru
      _
    %v16 = vld [vmem:[%s1] sm:$0xff]
    %v17 = vld [vmem:[%s1 + $0x8] sm:$0xff]
    %v18 = vld [vmem:[%s1 + $0x10] sm:$0xff]
    %v19 = vld [vmem:[%s1 + $0x18] sm:$0xff]
    %v20 = vld [vmem:[%s1 + $0x20] sm:$0xff]
    %v21 = vld [vmem:[%s1 + $0x28] sm:$0x1]
    %v22 = vld [vmem:[%s2] sm:$0xff]
    %v23 = vld [vmem:[%s2 + $0x8] sm:$0xff]
    %v24 = vld [vmem:[%s2 + $0x10] sm:$0xff]
    %v25 = vld [vmem:[%s2 + $0x18] sm:$0xff]
    %v26 = vld [vmem:[%s2 + $0x20] sm:$0x1]
    %v27 = vld [vmem:[%s0] sm:$0xff]
    %v28 = vld [vmem:[%s0 + $0x8] sm:$0xff]
    %v29 = vperm.slane %v21, 0
    %vm30 = vcmask 64512
    %v32 = vsel %vm30, %v27, 0
    %v35 = vsel %vm30, %v28, 0
    %37 = vmatpush.msra.mxu0 0.0
    %38 = vmatpush.msra.mxu0 0.0
    %39 = vmatpush.msra.mxu0 0.0
    %40 = vmatpush.msra.mxu0 0.0
    %41 = vmatpush.msra.mxu0 0.0
    %42 = vmatpush.msra.mxu0 0.0
    %43 = vmatpush.msra.mxu0 0.0
    %44 = vmatpush.msra.mxu0 0.0
    %45 = vmatpush.msra.mxu0 0.0
    %46 = vmatpush.msra.mxu0 0.0
    %47 = vmatpush.msra.mxu0 0.0
    %48 = vmatpush.msra.mxu0 0.0
    %49 = vmatpush.msra.mxu0 0.0
    %50 = vmatpush.msra.mxu0 0.0
    %51 = vmatpush.msra.mxu0 0.0
    %52 = vmatpush.msra.mxu0 %v16
    %53 = vmatmul.f32.gmra.mxu0 %v32
    %v54 = vpop.f32.mrf.mxu0
    %v55 = vadd.f32 %v29, %v54
    %56 = vmatmul.f32.gmra.mxu0 %v35
    %v57 = vpop.f32.mrf.mxu0
    %v58 = vadd.f32 %v29, %v57
    %59 = vdwg.mxu0
    %v60 = vpack.c.bf16 %v18, %v17
    %v61 = vpack.c.bf16 %v20, %v19
    %v62 = vtanh.pop %v55
    %v63 = vtanh.pop %v58
    %v64 = vpack.c.bf16 %v62, %v62
    %v65 = vpack.c.bf16 %v63, %v63
    %v68 = vunpack.c.l.b16 %v64
    %v69 = vunpack.c.l.b16 %v65
    %v70 = vrot.slane %v69, 7
    %vm71 = vcmask 1041409
    %v72 = vsel %vm71, %v70, %v68
    %v73 = vpack.c.b16 %v72, %v72
    %vm74 = vcmask 261120
    %v76 = vsel %vm74, %v73, 0
    %78 = vmatpush.bf16.msra.mxu0 0
    %79 = vmatpush.bf16.msra.mxu0 0
    %80 = vmatpush.bf16.msra.mxu0 0
    %81 = vmatpush.bf16.msra.mxu0 0
    %82 = vmatpush.bf16.msra.mxu0 0
    %83 = vmatpush.bf16.msra.mxu0 0
    %84 = vmatpush.bf16.msra.mxu0 %v61
    %85 = vmatpush.bf16.msra.mxu0 %v60
    %86 = vmatmul.bf16.gmra.mxu0 %v76
    %v87 = vpop.f32.mrf.mxu0
    %v88 = vadd.f32 0.0, %v87
    %v89 = vpop.f32.mrf.mxu0
    %90 = vdwg.mxu0
    %v92 = vrot.slane %v88, 7
    %v95 = vadd.f32 %v55, %v92
    %v96 = vadd.f32 %v58, %v88
    %v97 = vtanh.pop %v95
    %v98 = vtanh.pop %v96
    %v99 = vpack.c.bf16 %v97, %v97
    %v100 = vpack.c.bf16 %v98, %v98
    %v103 = vunpack.c.l.b16 %v99
    %v104 = vunpack.c.l.b16 %v100
    %v105 = vrot.slane %v103, 1
    %v106 = vsel %vm71, %v104, %v105
    %v107 = vpack.c.b16 %v106, %v106
    %v109 = vsel %vm74, %v107, 0
    %111 = vmatpush.bf16.msra.mxu0 0
    %112 = vmatpush.bf16.msra.mxu0 0
    %113 = vmatpush.bf16.msra.mxu0 0
    %114 = vmatpush.bf16.msra.mxu0 0
    %115 = vmatpush.bf16.msra.mxu0 0
    %116 = vmatpush.bf16.msra.mxu0 0
    %117 = vmatpush.bf16.msra.mxu0 %v61
    %118 = vmatpush.bf16.msra.mxu0 %v60
    %119 = vmatmul.bf16.gmra.mxu0 %v109
    %v120 = vpop.f32.mrf.mxu0
    %v121 = vadd.f32 0.0, %v120
    %v122 = vpop.f32.mrf.mxu0
    %123 = vdwg.mxu0
    %v125 = vrot.slane %v121, 6
    %v126 = vrot.slane %v121, 7
    %v129 = vadd.f32 %v55, %v125
    %v130 = vadd.f32 %v58, %v126
    %v131 = vtanh.pop %v129
    %v132 = vtanh.pop %v130
    %v133 = vpack.c.bf16 %v131, %v131
    %v134 = vpack.c.bf16 %v132, %v132
    %v137 = vunpack.c.l.b16 %v133
    %v138 = vunpack.c.l.b16 %v134
    %v139 = vrot.slane %v137, 2
    %v140 = vrot.slane %v138, 1
    %v141 = vsel %vm71, %v140, %v139
    %v142 = vpack.c.b16 %v141, %v141
    %v144 = vsel %vm74, %v142, 0
    %146 = vmatpush.bf16.msra.mxu0 0
    %147 = vmatpush.bf16.msra.mxu0 0
    %148 = vmatpush.bf16.msra.mxu0 0
    %149 = vmatpush.bf16.msra.mxu0 0
    %150 = vmatpush.bf16.msra.mxu0 0
    %151 = vmatpush.bf16.msra.mxu0 0
    %152 = vmatpush.bf16.msra.mxu0 %v61
    %153 = vmatpush.bf16.msra.mxu0 %v60
    %154 = vmatmul.bf16.gmra.mxu0 %v144
    %v155 = vpop.f32.mrf.mxu0
    %v156 = vadd.f32 0.0, %v155
    %v157 = vpop.f32.mrf.mxu0
    %158 = vdwg.mxu0
    %v160 = vrot.slane %v156, 5
    %v161 = vrot.slane %v156, 6
    %v164 = vadd.f32 %v55, %v160
    %v165 = vadd.f32 %v58, %v161
    %v166 = vtanh.pop %v164
    %v167 = vtanh.pop %v165
    %v168 = vpack.c.bf16 %v166, %v166
    %v169 = vpack.c.bf16 %v167, %v167
    %v172 = vunpack.c.l.b16 %v168
    %v173 = vunpack.c.l.b16 %v169
    %v174 = vrot.slane %v172, 3
    %v175 = vrot.slane %v173, 2
    %v176 = vsel %vm71, %v175, %v174
    %v177 = vpack.c.b16 %v176, %v176
    %v179 = vsel %vm74, %v177, 0
    %181 = vmatpush.bf16.msra.mxu0 0
    %182 = vmatpush.bf16.msra.mxu0 0
    %183 = vmatpush.bf16.msra.mxu0 0
    %184 = vmatpush.bf16.msra.mxu0 0
    %185 = vmatpush.bf16.msra.mxu0 0
    %186 = vmatpush.bf16.msra.mxu0 0
    %187 = vmatpush.bf16.msra.mxu0 %v61
    %188 = vmatpush.bf16.msra.mxu0 %v60
    %189 = vmatmul.bf16.gmra.mxu0 %v179
    %v190 = vpop.f32.mrf.mxu0
    %v191 = vadd.f32 0.0, %v190
    %v192 = vpop.f32.mrf.mxu0
    %193 = vdwg.mxu0
    %v195 = vrot.slane %v191, 4
    %v196 = vrot.slane %v191, 5
    %v199 = vadd.f32 %v55, %v195
    %v200 = vadd.f32 %v58, %v196
    %v201 = vtanh.pop %v199
    %v202 = vtanh.pop %v200
    %v203 = vpack.c.bf16 %v201, %v201
    %v204 = vpack.c.bf16 %v202, %v202
    %v207 = vunpack.c.l.b16 %v203
    %v208 = vunpack.c.l.b16 %v204
    %v209 = vrot.slane %v207, 4
    %v210 = vrot.slane %v208, 3
    %v211 = vsel %vm71, %v210, %v209
    %v212 = vpack.c.b16 %v211, %v211
    %v214 = vsel %vm74, %v212, 0
    %216 = vmatpush.bf16.msra.mxu0 0
    %217 = vmatpush.bf16.msra.mxu0 0
    %218 = vmatpush.bf16.msra.mxu0 0
    %219 = vmatpush.bf16.msra.mxu0 0
    %220 = vmatpush.bf16.msra.mxu0 0
    %221 = vmatpush.bf16.msra.mxu0 0
    %222 = vmatpush.bf16.msra.mxu0 %v61
    %223 = vmatpush.bf16.msra.mxu0 %v60
    %224 = vmatmul.bf16.gmra.mxu0 %v214
    %v225 = vpop.f32.mrf.mxu0
    %v226 = vadd.f32 0.0, %v225
    %v227 = vpop.f32.mrf.mxu0
    %228 = vdwg.mxu0
    %v230 = vrot.slane %v226, 3
    %v231 = vrot.slane %v226, 4
    %v234 = vadd.f32 %v55, %v230
    %v235 = vadd.f32 %v58, %v231
    %v236 = vtanh.pop %v234
    %v237 = vtanh.pop %v235
    %v238 = vpack.c.bf16 %v236, %v236
    %v239 = vpack.c.bf16 %v237, %v237
    %v242 = vunpack.c.l.b16 %v238
    %v243 = vunpack.c.l.b16 %v239
    %v244 = vrot.slane %v242, 5
    %v245 = vrot.slane %v243, 4
    %v246 = vsel %vm71, %v245, %v244
    %v247 = vpack.c.b16 %v246, %v246
    %v249 = vsel %vm74, %v247, 0
    %251 = vmatpush.bf16.msra.mxu0 0
    %252 = vmatpush.bf16.msra.mxu0 0
    %253 = vmatpush.bf16.msra.mxu0 0
    %254 = vmatpush.bf16.msra.mxu0 0
    %255 = vmatpush.bf16.msra.mxu0 0
    %256 = vmatpush.bf16.msra.mxu0 0
    %257 = vmatpush.bf16.msra.mxu0 %v61
    %258 = vmatpush.bf16.msra.mxu0 %v60
    %259 = vmatmul.bf16.gmra.mxu0 %v249
    %v260 = vpop.f32.mrf.mxu0
    %v261 = vadd.f32 0.0, %v260
    %v262 = vpop.f32.mrf.mxu0
    %263 = vdwg.mxu0
    %v265 = vrot.slane %v261, 2
    %v266 = vrot.slane %v261, 3
    %v269 = vadd.f32 %v55, %v265
    %v270 = vadd.f32 %v58, %v266
    %v271 = vtanh.pop %v269
    %v272 = vtanh.pop %v270
    %v273 = vpack.c.bf16 %v271, %v271
    %v274 = vpack.c.bf16 %v272, %v272
    %v277 = vunpack.c.l.b16 %v273
    %v278 = vunpack.c.l.b16 %v274
    %v279 = vrot.slane %v277, 6
    %v280 = vrot.slane %v278, 5
    %v281 = vsel %vm71, %v280, %v279
    %v282 = vpack.c.b16 %v281, %v281
    %v284 = vsel %vm74, %v282, 0
    %286 = vmatpush.bf16.msra.mxu0 0
    %287 = vmatpush.bf16.msra.mxu0 0
    %288 = vmatpush.bf16.msra.mxu0 0
    %289 = vmatpush.bf16.msra.mxu0 0
    %290 = vmatpush.bf16.msra.mxu0 0
    %291 = vmatpush.bf16.msra.mxu0 0
    %292 = vmatpush.bf16.msra.mxu0 %v61
    %293 = vmatpush.bf16.msra.mxu0 %v60
    %294 = vmatmul.bf16.gmra.mxu0 %v284
    %v295 = vpop.f32.mrf.mxu0
    %v296 = vadd.f32 0.0, %v295
    %v297 = vpop.f32.mrf.mxu0
    %298 = vdwg.mxu0
    %v300 = vrot.slane %v296, 1
    %v301 = vrot.slane %v296, 2
    %v304 = vadd.f32 %v55, %v300
    %v305 = vadd.f32 %v58, %v301
    %v306 = vtanh.pop %v304
    %v307 = vtanh.pop %v305
    %v308 = vperm.slane %v26, 0
    %v311 = vrot.slane %v306, 7
    %v312 = vrot.slane %v307, 6
    %v313 = vsel %vm71, %v312, %v311
    %v314 = vsel %vm74, %v313, 0
    %316 = vmatpush.msra.mxu0 0.0
    %317 = vmatpush.msra.mxu0 0.0
    %318 = vmatpush.msra.mxu0 0.0
    %319 = vmatpush.msra.mxu0 0.0
    %320 = vmatpush.msra.mxu0 0.0
    %321 = vmatpush.msra.mxu0 0.0
    %322 = vmatpush.msra.mxu0 0.0
    %323 = vmatpush.msra.mxu0 0.0
    %324 = vmatpush.msra.mxu0 0.0
    %325 = vmatpush.msra.mxu0 0.0
    %326 = vmatpush.msra.mxu0 0.0
    %327 = vmatpush.msra.mxu0 0.0
    %328 = vmatpush.msra.mxu0 %v25
    %329 = vmatpush.msra.mxu0 %v24
    %330 = vmatpush.msra.mxu0 %v23
    %331 = vmatpush.msra.mxu0 %v22
    %332 = vmatmul.f32.gmra.mxu0 %v314
    %v333 = vpop.f32.mrf.mxu0
    %v334 = vadd.f32 %v308, %v333
    %335 = vdwg.mxu0
    %vm336 = vcmask 25600
    %337 = vst.msk [vmem:[#allocation2] sm:$0x3] %vm336, %v334
    // Predicated region
    $region14: #{tpu_custom_call.1} parent=1 // pred_check
      _
    $region15: #{tpu_custom_call.1} parent=1 // pred_check_branch
      %339 = sbr.rel (0) target = $region17
    $region16: #{tpu_custom_call.1} parent=1 // pred_region
      %341 = vsyncadd [#allocation3], 0
      %s343 = sshll.u32 [#allocation2], 4
      %s344 = int_to_ptr.vmem [resolvable:$true] %s343
      %s345 = sshll.u32 %s3, 4
      %s346 = int_to_ptr.hbm [resolvable:$true] %s345
      %348 = dma.vmem_to_hbm [thread:$0]  %s344, 32, %s346, [#allocation3]
    $region17: #{tpu_custom_call.1} parent=1 // pred_fallthru
      _
    // Predicated region
    $region18: #{tpu_custom_call.1} parent=1 // pred_check
      _
    $region19: #{tpu_custom_call.1} parent=1 // pred_check_branch
      %350 = sbr.rel (0) target = $region21
    $region20: #{tpu_custom_call.1} parent=1 // pred_region
      %352 = dma.done [#allocation3], 32
    $region21: #{tpu_custom_call.1} parent=1 // pred_fallthru
      _
    %353 = vsyncpa [#allocation3], 1

</llo_original>
